<compile_context>
chip_gen: v6e
topology: v6e:2x2x1
jax: 0.10.0
libtpu: 0.0.40
codegen_flags: <defaults>
</compile_context>

<pallas_src>
import functools

import jax
import jax.numpy as jnp
from jax import lax
from jax.experimental import pallas as pl
from jax.experimental.pallas import tpu as pltpu


def _round_up(x, m):
    return (x + m - 1) // m * m


def _mlp_kernel(x_ref,
                w_in_ref, b_in_ref,
                w_h1_ref, b_h1_ref,
                w_h2_ref, b_h2_ref,
                w_pr_ref, b_pr_ref,
                o_ref,
                *, n_layer, compute_dtype, unroll_hidden2=8):
    """Whole forward pass for one batch tile, all operands resident in VMEM."""
    x = x_ref[...].astype(compute_dtype)   # no-op when x is already bf16

    # input_layer + relu (bias add / ReLU stay f32: VPU/EUP are f32 on v5e).
    h = jnp.dot(x, w_in_ref[...], preferred_element_type=jnp.float32)
    h = jnp.maximum(h + b_in_ref[...], 0.0)

    # hidden1 + relu
    h = jnp.dot(h.astype(compute_dtype), w_h1_ref[...],
                preferred_element_type=jnp.float32)
    h = jnp.maximum(h + b_h1_ref[...], 0.0)

    # hidden2 applied n_layer times (shared weights).  Hoist both the weight
    # load AND the bias broadcast out of the loop (JAX does not CSE
    # broadcast_in_dim, so broadcasting inside the loop re-runs on the VPU
    # every layer).
    w_h2 = w_h2_ref[...]
    b_h2 = jnp.broadcast_to(b_h2_ref[...], h.shape)

    def layer(hh):
        hh = jnp.dot(hh.astype(compute_dtype), w_h2,
                     preferred_element_type=jnp.float32)
        return jnp.maximum(hh + b_h2, 0.0)

    if n_layer <= unroll_hidden2:
        for _ in range(n_layer):
            h = layer(h)
    else:
        # Large depth: bound code size / live ranges with a rolled loop.
        h = lax.fori_loop(0, n_layer, lambda _, hh: layer(hh), h, unroll=2)

    # predict (no activation); output block is lane-dense (padded to 128).
    out = jnp.dot(h.astype(compute_dtype), w_pr_ref[...],
                  preferred_element_type=jnp.float32)
    o_ref[...] = (out + b_pr_ref[...]).astype(o_ref.dtype)


def net_forward(x, params, n_layer, *, compute_dtype=jnp.bfloat16,
                max_tile_b=256, split_batch_above=64):
    """x: [B, n_feature] float32.  params: dict of (in,out) weights + (1,out) biases."""
    B, F = x.shape
    N1 = params["w_in"].shape[1]
    N2 = params["w_h1"].shape[1]
    O = params["w_pr"].shape[1]

    # Lane-pad every feature dimension to a multiple of 128 (exact for this MLP).
    Fp = _round_up(F, 128)
    N1p = _round_up(N1, 128)
    N2p = _round_up(N2, 128)
    Op = _round_up(O, 128)

    def pad2(a, rows, cols):
        return jnp.pad(a, ((0, rows - a.shape[0]), (0, cols - a.shape[1])))

    mm_dtype = jnp.dtype(compute_dtype)
    w_in = pad2(params["w_in"], Fp, N1p).astype(mm_dtype)
    w_h1 = pad2(params["w_h1"], N1p, N2p).astype(mm_dtype)
    w_h2 = pad2(params["w_h2"], N2p, N2p).astype(mm_dtype)
    w_pr = pad2(params["w_pr"], N2p, Op).astype(mm_dtype)
    b_in = pad2(params["b_in"], 1, N1p)   # biases stay f32
    b_h1 = pad2(params["b_h1"], 1, N2p)
    b_h2 = pad2(params["b_h2"], 1, N2p)
    b_pr = pad2(params["b_pr"], 1, Op)

    # Batch tiling: whole batch in one grid step when small; once B exceeds
    # split_batch_above, split into >= 2 programs so the "parallel" grid axis
    # can shard across v7x's two TensorCores.
    if B > split_batch_above:
        tile_b = min(max_tile_b, _round_up(-(-B // 2), 8))
    else:
        tile_b = min(_round_up(B, 8), max_tile_b)
    Bp = _round_up(B, tile_b)

    # Cast x to the matmul dtype in the wrapper: halves the only
    # batch-scaling DMA when bf16 and removes the in-kernel cast.
    x_p = jnp.pad(x, ((0, Bp - B), (0, Fp - F))).astype(mm_dtype)

    grid = (Bp // tile_b,)

    def _const(shape):
        # Constant index_map -> block stays VMEM-resident across the batch
        # grid; Buffered(1) -> single-buffered (it never changes), halving its
        # VMEM footprint.
        return pl.BlockSpec(shape, lambda i: (0, 0),
                            pipeline_mode=pl.Buffered(1))

    kernel = functools.partial(_mlp_kernel, n_layer=n_layer,
                               compute_dtype=mm_dtype)

    mm_bytes = mm_dtype.itemsize
    flops = 2 * Bp * (Fp * N1p + N1p * N2p + n_layer * N2p * N2p + N2p * Op)
    bytes_accessed = (Bp * Fp * mm_bytes                                   # x
                      + (Fp * N1p + N1p * N2p + N2p * N2p + N2p * Op) * mm_bytes  # W
                      + (N1p + 2 * N2p + Op) * 4                            # biases
                      + Bp * Op * 4)                                        # out
    cost = pl.CostEstimate(flops=flops, transcendentals=0,
                           bytes_accessed=bytes_accessed)

    out_p = pl.pallas_call(
        kernel,
        out_shape=jax.ShapeDtypeStruct((Bp, Op), jnp.float32),
        grid_spec=pltpu.PrefetchScalarGridSpec(
            num_scalar_prefetch=0,
            grid=grid,
            in_specs=[
                pl.BlockSpec((tile_b, Fp), lambda i: (i, 0)),   # x tile
                _const((Fp, N1p)), _const((1, N1p)),            # input_layer
                _const((N1p, N2p)), _const((1, N2p)),           # hidden1
                _const((N2p, N2p)), _const((1, N2p)),           # hidden2 (shared)
                _const((N2p, Op)), _const((1, Op)),             # predict
            ],
            out_specs=pl.BlockSpec((tile_b, Op), lambda i: (i, 0)),
        ),
        compiler_params=pltpu.CompilerParams(
            dimension_semantics=("parallel",)),
        cost_estimate=cost,
    )(x_p, w_in, b_in, w_h1, b_h1, w_h2, b_h2, w_pr, b_pr)

    # Slice the padding back off (pure layout plumbing).
    return out_p[:B, :O]


def init_params(key, n_feature, n_output, n_neuron1, n_neuron2):
    """Deterministic init mimicking torch.nn.Linear's U(-1/sqrt(fan_in), 1/sqrt(fan_in)).
    Weights stored as (in_features, out_features)."""
    def linear(k, fan_in, fan_out):
        kw, kb = jax.random.split(k)
        bound = 1.0 / jnp.sqrt(float(fan_in))
        w = jax.random.uniform(kw, (fan_in, fan_out), jnp.float32, -bound, bound)
        b = jax.random.uniform(kb, (1, fan_out), jnp.float32, -bound, bound)
        return w, b

    k0, k1, k2, k3 = jax.random.split(key, 4)
    w_in, b_in = linear(k0, n_feature, n_neuron1)
    w_h1, b_h1 = linear(k1, n_neuron1, n_neuron2)
    w_h2, b_h2 = linear(k2, n_neuron2, n_neuron2)
    w_pr, b_pr = linear(k3, n_neuron2, n_output)
    return dict(w_in=w_in, b_in=b_in, w_h1=w_h1, b_h1=b_h1,
                w_h2=w_h2, b_h2=b_h2, w_pr=w_pr, b_pr=b_pr)


def net_forward_ref(x, p, n_layer):
    """Pure-JAX reference (matches PyTorch forward semantics)."""
    h = jnp.maximum(x @ p["w_in"] + p["b_in"], 0.0)
    h = jnp.maximum(h @ p["w_h1"] + p["b_h1"], 0.0)
    for _ in range(n_layer):
        h = jnp.maximum(h @ p["w_h2"] + p["b_h2"], 0.0)
    return h @ p["w_pr"] + p["b_pr"]


if __name__ == "__main__":
    # Small shapes consistent with the module.
    batch = 16
    n_feature = 64
    n_neuron1 = 128
    n_neuron2 = 128
    n_output = 8
    n_layer = 2

    key = jax.random.PRNGKey(0)
    kx, kp = jax.random.split(key)
    x = jax.random.normal(kx, (batch, n_feature), jnp.float32)
    params = init_params(kp, n_feature, n_output, n_neuron1, n_neuron2)

    ref = net_forward_ref(x, params, n_layer)

    # Primary bf16 matmul path (f32 accumulation): looser tolerance.
    out_bf16 = jax.block_until_ready(net_forward(x, params, n_layer))
    assert out_bf16.shape == (batch, n_output)
    assert jnp.allclose(out_bf16, ref, atol=5e-2, rtol=5e-2), \
        "mismatch vs reference (bf16)"

    # f32 matmul path: tight tolerance.
    out_f32 = jax.block_until_ready(
        net_forward(x, params, n_layer, compute_dtype=jnp.float32))
    assert jnp.allclose(out_f32, ref, atol=1e-4, rtol=1e-4), \
        "mismatch vs reference (f32)"

    # Larger batch exercises the >=2-program "parallel" grid (v7x megacore path).
    batch2 = 96
    x2 = jax.random.normal(jax.random.PRNGKey(1), (batch2, n_feature), jnp.float32)
    ref2 = net_forward_ref(x2, params, n_layer)
    out2 = jax.block_until_ready(net_forward(x2, params, n_layer))
    assert out2.shape == (batch2, n_output)
    assert jnp.allclose(out2, ref2, atol=5e-2, rtol=5e-2), \
        "mismatch vs reference (bf16, split batch)"

    print("KERNEL_OK")
</pallas_src>

<mosaic_0001>
module attributes {stable_mosaic.version = 11 : i64} {
  func.func @_mlp_kernel(%arg0: i32, %arg1: memref<16x128xbf16, #tpu.memory_space<vmem>>, %arg2: memref<128x128xbf16, #tpu.memory_space<vmem>>, %arg3: memref<1x128xf32, #tpu.memory_space<vmem>>, %arg4: memref<128x128xbf16, #tpu.memory_space<vmem>>, %arg5: memref<1x128xf32, #tpu.memory_space<vmem>>, %arg6: memref<128x128xbf16, #tpu.memory_space<vmem>>, %arg7: memref<1x128xf32, #tpu.memory_space<vmem>>, %arg8: memref<128x128xbf16, #tpu.memory_space<vmem>>, %arg9: memref<1x128xf32, #tpu.memory_space<vmem>>, %arg10: memref<16x128xf32, #tpu.memory_space<vmem>>) attributes {dimension_semantics = [#tpu.dimension_semantics<parallel>], iteration_bounds = array<i64: 1>, scalar_prefetch = 0 : i64, scratch_operands = 0 : i64, tpu.core_type = #tpu.core_type<tc>, window_params = [{transform_indices = @transform_0, window_bounds = array<i64: 16, 128>}, {pipeline_mode = #tpu.pipeline_mode<synchronous>, transform_indices = @transform_1, window_bounds = array<i64: 128, 128>}, {pipeline_mode = #tpu.pipeline_mode<synchronous>, transform_indices = @transform_2, window_bounds = array<i64: 1, 128>}, {pipeline_mode = #tpu.pipeline_mode<synchronous>, transform_indices = @transform_3, window_bounds = array<i64: 128, 128>}, {pipeline_mode = #tpu.pipeline_mode<synchronous>, transform_indices = @transform_4, window_bounds = array<i64: 1, 128>}, {pipeline_mode = #tpu.pipeline_mode<synchronous>, transform_indices = @transform_5, window_bounds = array<i64: 128, 128>}, {pipeline_mode = #tpu.pipeline_mode<synchronous>, transform_indices = @transform_6, window_bounds = array<i64: 1, 128>}, {pipeline_mode = #tpu.pipeline_mode<synchronous>, transform_indices = @transform_7, window_bounds = array<i64: 128, 128>}, {pipeline_mode = #tpu.pipeline_mode<synchronous>, transform_indices = @transform_8, window_bounds = array<i64: 1, 128>}, {transform_indices = @transform_9, window_bounds = array<i64: 16, 128>}]} {
    %c0 = arith.constant 0 : index
    %c0_0 = arith.constant 0 : index
    %0 = vector.load %arg1[%c0, %c0_0] : memref<16x128xbf16, #tpu.memory_space<vmem>>, vector<16x128xbf16>
    %c0_1 = arith.constant 0 : index
    %c0_2 = arith.constant 0 : index
    %1 = vector.load %arg2[%c0_1, %c0_2] : memref<128x128xbf16, #tpu.memory_space<vmem>>, vector<128x128xbf16>
    %cst = arith.constant dense<0.000000e+00> : vector<16x128xf32>
    %2 = tpu.matmul %0, %1, %cst {dimension_numbers = #tpu.dot_dimension_numbers<[1], [0], [0], [1], [0, 0, 1, 1], [], []>} : vector<16x128xbf16>, vector<128x128xbf16>, vector<16x128xf32> -> vector<16x128xf32>
    %c0_3 = arith.constant 0 : index
    %c0_4 = arith.constant 0 : index
    %3 = vector.load %arg3[%c0_3, %c0_4] : memref<1x128xf32, #tpu.memory_space<vmem>>, vector<1x128xf32>
    %4 = vector.broadcast %3 : vector<1x128xf32> to vector<16x128xf32>
    %5 = arith.addf %2, %4 : vector<16x128xf32>
    %cst_5 = arith.constant 0.000000e+00 : f32
    %6 = vector.broadcast %cst_5 : f32 to vector<16x128xf32>
    %7 = arith.maximumf %5, %6 : vector<16x128xf32>
    %8 = arith.truncf %7 : vector<16x128xf32> to vector<16x128xbf16>
    %c0_6 = arith.constant 0 : index
    %c0_7 = arith.constant 0 : index
    %9 = vector.load %arg4[%c0_6, %c0_7] : memref<128x128xbf16, #tpu.memory_space<vmem>>, vector<128x128xbf16>
    %cst_8 = arith.constant dense<0.000000e+00> : vector<16x128xf32>
    %10 = tpu.matmul %8, %9, %cst_8 {dimension_numbers = #tpu.dot_dimension_numbers<[1], [0], [0], [1], [0, 0, 1, 1], [], []>} : vector<16x128xbf16>, vector<128x128xbf16>, vector<16x128xf32> -> vector<16x128xf32>
    %c0_9 = arith.constant 0 : index
    %c0_10 = arith.constant 0 : index
    %11 = vector.load %arg5[%c0_9, %c0_10] : memref<1x128xf32, #tpu.memory_space<vmem>>, vector<1x128xf32>
    %12 = vector.broadcast %11 : vector<1x128xf32> to vector<16x128xf32>
    %13 = arith.addf %10, %12 : vector<16x128xf32>
    %cst_11 = arith.constant 0.000000e+00 : f32
    %14 = vector.broadcast %cst_11 : f32 to vector<16x128xf32>
    %15 = arith.maximumf %13, %14 : vector<16x128xf32>
    %c0_12 = arith.constant 0 : index
    %c0_13 = arith.constant 0 : index
    %16 = vector.load %arg6[%c0_12, %c0_13] : memref<128x128xbf16, #tpu.memory_space<vmem>>, vector<128x128xbf16>
    %c0_14 = arith.constant 0 : index
    %c0_15 = arith.constant 0 : index
    %17 = vector.load %arg7[%c0_14, %c0_15] : memref<1x128xf32, #tpu.memory_space<vmem>>, vector<1x128xf32>
    %18 = vector.shape_cast %17 : vector<1x128xf32> to vector<1x128xf32>
    %19 = vector.broadcast %18 : vector<1x128xf32> to vector<16x128xf32>
    %20 = arith.truncf %15 : vector<16x128xf32> to vector<16x128xbf16>
    %cst_16 = arith.constant dense<0.000000e+00> : vector<16x128xf32>
    %21 = tpu.matmul %20, %16, %cst_16 {dimension_numbers = #tpu.dot_dimension_numbers<[1], [0], [0], [1], [0, 0, 1, 1], [], []>} : vector<16x128xbf16>, vector<128x128xbf16>, vector<16x128xf32> -> vector<16x128xf32>
    %22 = arith.addf %21, %19 : vector<16x128xf32>
    %cst_17 = arith.constant 0.000000e+00 : f32
    %23 = vector.broadcast %cst_17 : f32 to vector<16x128xf32>
    %24 = arith.maximumf %22, %23 : vector<16x128xf32>
    %25 = arith.truncf %24 : vector<16x128xf32> to vector<16x128xbf16>
    %cst_18 = arith.constant dense<0.000000e+00> : vector<16x128xf32>
    %26 = tpu.matmul %25, %16, %cst_18 {dimension_numbers = #tpu.dot_dimension_numbers<[1], [0], [0], [1], [0, 0, 1, 1], [], []>} : vector<16x128xbf16>, vector<128x128xbf16>, vector<16x128xf32> -> vector<16x128xf32>
    %27 = arith.addf %26, %19 : vector<16x128xf32>
    %cst_19 = arith.constant 0.000000e+00 : f32
    %28 = vector.broadcast %cst_19 : f32 to vector<16x128xf32>
    %29 = arith.maximumf %27, %28 : vector<16x128xf32>
    %30 = arith.truncf %29 : vector<16x128xf32> to vector<16x128xbf16>
    %c0_20 = arith.constant 0 : index
    %c0_21 = arith.constant 0 : index
    %31 = vector.load %arg8[%c0_20, %c0_21] : memref<128x128xbf16, #tpu.memory_space<vmem>>, vector<128x128xbf16>
    %cst_22 = arith.constant dense<0.000000e+00> : vector<16x128xf32>
    %32 = tpu.matmul %30, %31, %cst_22 {dimension_numbers = #tpu.dot_dimension_numbers<[1], [0], [0], [1], [0, 0, 1, 1], [], []>} : vector<16x128xbf16>, vector<128x128xbf16>, vector<16x128xf32> -> vector<16x128xf32>
    %c0_23 = arith.constant 0 : index
    %c0_24 = arith.constant 0 : index
    %33 = vector.load %arg9[%c0_23, %c0_24] : memref<1x128xf32, #tpu.memory_space<vmem>>, vector<1x128xf32>
    %34 = vector.broadcast %33 : vector<1x128xf32> to vector<16x128xf32>
    %35 = arith.addf %32, %34 : vector<16x128xf32>
    %c0_25 = arith.constant 0 : index
    %c0_26 = arith.constant 0 : index
    %36 = vector.load %arg10[%c0_25, %c0_26] : memref<16x128xf32, #tpu.memory_space<vmem>>, vector<16x128xf32>
    tpu.vector_store %arg10[%c0_25, %c0_26], %35 {strides = array<i32>} : memref<16x128xf32, #tpu.memory_space<vmem>>, vector<16x128xf32>,
    return
  }
  func.func @transform_0(%arg0: i32) -> (i32, i32) {
    %c0_i32 = arith.constant 0 : i32
    %c0_i32_0 = arith.constant 0 : i32
    return %arg0, %c0_i32 : i32, i32
  }
  func.func @transform_1(%arg0: i32) -> (i32, i32) {
    %c0_i32 = arith.constant 0 : i32
    %c0_i32_0 = arith.constant 0 : i32
    %c0_i32_1 = arith.constant 0 : i32
    return %c0_i32, %c0_i32_0 : i32, i32
  }
  func.func @transform_2(%arg0: i32) -> (i32, i32) {
    %c0_i32 = arith.constant 0 : i32
    %c0_i32_0 = arith.constant 0 : i32
    %c0_i32_1 = arith.constant 0 : i32
    return %c0_i32, %c0_i32_0 : i32, i32
  }
  func.func @transform_3(%arg0: i32) -> (i32, i32) {
    %c0_i32 = arith.constant 0 : i32
    %c0_i32_0 = arith.constant 0 : i32
    %c0_i32_1 = arith.constant 0 : i32
    return %c0_i32, %c0_i32_0 : i32, i32
  }
  func.func @transform_4(%arg0: i32) -> (i32, i32) {
    %c0_i32 = arith.constant 0 : i32
    %c0_i32_0 = arith.constant 0 : i32
    %c0_i32_1 = arith.constant 0 : i32
    return %c0_i32, %c0_i32_0 : i32, i32
  }
  func.func @transform_5(%arg0: i32) -> (i32, i32) {
    %c0_i32 = arith.constant 0 : i32
    %c0_i32_0 = arith.constant 0 : i32
    %c0_i32_1 = arith.constant 0 : i32
    return %c0_i32, %c0_i32_0 : i32, i32
  }
  func.func @transform_6(%arg0: i32) -> (i32, i32) {
    %c0_i32 = arith.constant 0 : i32
    %c0_i32_0 = arith.constant 0 : i32
    %c0_i32_1 = arith.constant 0 : i32
    return %c0_i32, %c0_i32_0 : i32, i32
  }
  func.func @transform_7(%arg0: i32) -> (i32, i32) {
    %c0_i32 = arith.constant 0 : i32
    %c0_i32_0 = arith.constant 0 : i32
    %c0_i32_1 = arith.constant 0 : i32
    return %c0_i32, %c0_i32_0 : i32, i32
  }
  func.func @transform_8(%arg0: i32) -> (i32, i32) {
    %c0_i32 = arith.constant 0 : i32
    %c0_i32_0 = arith.constant 0 : i32
    %c0_i32_1 = arith.constant 0 : i32
    return %c0_i32, %c0_i32_0 : i32, i32
  }
  func.func @transform_9(%arg0: i32) -> (i32, i32) {
    %c0_i32 = arith.constant 0 : i32
    %c0_i32_0 = arith.constant 0 : i32
    return %arg0, %c0_i32 : i32, i32
  }
}

</mosaic_0001>

<llo_original>
// kernel: tpu_custom_call.1
$region0: #{tpu_custom_call.1}
  #allocation0 [shape = 'u32[]', space=smem, size = 0x4, offset = 0x4, fixed_abs, tag = 'smem constant byte address 0x4 - core index']
  #allocation1 [shape = 'u32[144,128]{1,0:T(1,128)}', space=vmem, size = 0x12000, scoped, tag = 'internal scratch']
  %s0 = inlined_call_operand.hbm [shape: bf16[16,128], index: 0, kind: input, shape index: {}]
  %s1 = inlined_call_operand.hbm [shape: bf16[128,128], index: 1, kind: input, shape index: {}]
  %s2 = inlined_call_operand.vmem [shape: f32[1,128], index: 2, kind: input, shape index: {}]
  %s3 = inlined_call_operand.hbm [shape: bf16[128,128], index: 3, kind: input, shape index: {}]
  %s4 = inlined_call_operand.vmem [shape: f32[1,128], index: 4, kind: input, shape index: {}]
  %s5 = inlined_call_operand.hbm [shape: bf16[128,128], index: 5, kind: input, shape index: {}]
  %s6 = inlined_call_operand.vmem [shape: f32[1,128], index: 6, kind: input, shape index: {}]
  %s7 = inlined_call_operand.hbm [shape: bf16[128,128], index: 7, kind: input, shape index: {}]
  %s8 = inlined_call_operand.vmem [shape: f32[1,128], index: 8, kind: input, shape index: {}]
  %s9 = inlined_call_operand.hbm [shape: f32[16,128], index: 9, kind: output, shape index: {}]
  %s10 = sld [smem:[#allocation0]]
  $region66: #{tpu_custom_call.1} parent=0
    _
  %s12 = ssub.s32 1, %s10
  %s13 = scalar_select 0, %s12, %s10
  $region1: #{tpu_custom_call.1} parent=0
    #allocation2 [shape = 'u8[4096]{0}', space=vmem, size = 0x1000, scoped, tag = 'input window, operand 0, single buffered']
    #allocation3 [shape = 's32[1]{0}', space=sflag, size = 0x4, scoped, tag = 'scoped memory for tpu_custom_call.1']
    #allocation4 [shape = 's32[1]{0}', space=sflag, size = 0x4, scoped, tag = 'scoped memory for tpu_custom_call.1']
    #allocation5 [shape = 'u8[32768]{0}', space=vmem, size = 0x8000, scoped, tag = 'input window, operand 1, single buffered']
    #allocation6 [shape = 's32[1]{0}', space=sflag, size = 0x4, scoped, tag = 'scoped memory for tpu_custom_call.1']
    #allocation7 [shape = 'u8[32768]{0}', space=vmem, size = 0x8000, scoped, tag = 'input window, operand 3, single buffered']
    #allocation8 [shape = 'u8[32768]{0}', space=vmem, size = 0x8000, scoped, tag = 'input window, operand 5, single buffered']
    #allocation9 [shape = 's32[1]{0}', space=sflag, size = 0x4, scoped, tag = 'scoped memory for tpu_custom_call.1']
    #allocation10 [shape = 'u8[32768]{0}', space=vmem, size = 0x8000, scoped, tag = 'input window, operand 7, single buffered']
    #allocation11 [shape = 'u8[8192]{0}', space=vmem, size = 0x2000, scoped, tag = 'output window, operand 0, single buffered']
    %14 = vsyncpa [#allocation3], 0
    %15 = vsyncpa [#allocation6], 0
    %16 = vsyncpa [#allocation9], 0
    %17 = vsyncpa [#allocation4], 0
    // Predicated region
    $region2: #{tpu_custom_call.1} parent=1 // pred_check
      _
    $region3: #{tpu_custom_call.1} parent=1 // pred_check_branch
      %19 = sbr.rel (0) target = $region5
    $region4: #{tpu_custom_call.1} parent=1 // pred_region
      %s21 = ssub.s32 128, 128
      %22 = vsyncadd [#allocation3], %s21
      %s23 = sshll.u32 [#allocation2], 4
      %s24 = int_to_ptr.vmem [resolvable:$true] %s23
      %29 = dma.hbm_to_vmem [thread:$0]  %s0, 128, %s24, [#allocation3], 64, 64, 4
    $region5: #{tpu_custom_call.1} parent=1 // pred_fallthru
      _
    // Predicated region
    $region6: #{tpu_custom_call.1} parent=1 // pred_check
      _
    $region7: #{tpu_custom_call.1} parent=1 // pred_check_branch
      %31 = sbr.rel (0) target = $region9
    $region8: #{tpu_custom_call.1} parent=1 // pred_region
      %s33 = ssub.s32 1024, 1024
      %34 = vsyncadd [#allocation6], %s33
      %s35 = sshll.u32 [#allocation5], 4
      %s36 = int_to_ptr.vmem [resolvable:$true] %s35
      %41 = dma.hbm_to_vmem [thread:$0]  %s1, 1024, %s36, [#allocation6], 64, 64, 4
    $region9: #{tpu_custom_call.1} parent=1 // pred_fallthru
      _
    // Predicated region
    $region10: #{tpu_custom_call.1} parent=1 // pred_check
      _
    $region11: #{tpu_custom_call.1} parent=1 // pred_check_branch
      %43 = sbr.rel (0) target = $region13
    $region12: #{tpu_custom_call.1} parent=1 // pred_region
      _
    $region13: #{tpu_custom_call.1} parent=1 // pred_fallthru
      _
    // Predicated region
    $region14: #{tpu_custom_call.1} parent=1 // pred_check
      _
    $region15: #{tpu_custom_call.1} parent=1 // pred_check_branch
      %45 = sbr.rel (0) target = $region17
    $region16: #{tpu_custom_call.1} parent=1 // pred_region
      %s47 = ssub.s32 1024, 1024
      %48 = vsyncadd [#allocation6], %s47
      %s49 = sshll.u32 [#allocation7], 4
      %s50 = int_to_ptr.vmem [resolvable:$true] %s49
      %55 = dma.hbm_to_vmem [thread:$0]  %s3, 1024, %s50, [#allocation6], 64, 64, 4
    $region17: #{tpu_custom_call.1} parent=1 // pred_fallthru
      _
    // Predicated region
    $region18: #{tpu_custom_call.1} parent=1 // pred_check
      _
    $region19: #{tpu_custom_call.1} parent=1 // pred_check_branch
      %57 = sbr.rel (0) target = $region21
    $region20: #{tpu_custom_call.1} parent=1 // pred_region
      _
    $region21: #{tpu_custom_call.1} parent=1 // pred_fallthru
      _
    // Predicated region
    $region22: #{tpu_custom_call.1} parent=1 // pred_check
      _
    $region23: #{tpu_custom_call.1} parent=1 // pred_check_branch
      %59 = sbr.rel (0) target = $region25
    $region24: #{tpu_custom_call.1} parent=1 // pred_region
      %s61 = ssub.s32 1024, 1024
      %62 = vsyncadd [#allocation9], %s61
      %s63 = sshll.u32 [#allocation8], 4
      %s64 = int_to_ptr.vmem [resolvable:$true] %s63
      %69 = dma.hbm_to_vmem [thread:$0]  %s5, 1024, %s64, [#allocation9], 64, 64, 4
    $region25: #{tpu_custom_call.1} parent=1 // pred_fallthru
      _
    // Predicated region
    $region26: #{tpu_custom_call.1} parent=1 // pred_check
      _
    $region27: #{tpu_custom_call.1} parent=1 // pred_check_branch
      %71 = sbr.rel (0) target = $region29
    $region28: #{tpu_custom_call.1} parent=1 // pred_region
      _
    $region29: #{tpu_custom_call.1} parent=1 // pred_fallthru
      _
    // Predicated region
    $region30: #{tpu_custom_call.1} parent=1 // pred_check
      _
    $region31: #{tpu_custom_call.1} parent=1 // pred_check_branch
      %73 = sbr.rel (0) target = $region33
    $region32: #{tpu_custom_call.1} parent=1 // pred_region
      %s75 = ssub.s32 1024, 1024
      %76 = vsyncadd [#allocation9], %s75
      %s77 = sshll.u32 [#allocation10], 4
      %s78 = int_to_ptr.vmem [resolvable:$true] %s77
      %83 = dma.hbm_to_vmem [thread:$0]  %s7, 1024, %s78, [#allocation9], 64, 64, 4
    $region33: #{tpu_custom_call.1} parent=1 // pred_fallthru
      _
    // Predicated region
    $region34: #{tpu_custom_call.1} parent=1 // pred_check
      _
    $region35: #{tpu_custom_call.1} parent=1 // pred_check_branch
      %85 = sbr.rel (0) target = $region37
    $region36: #{tpu_custom_call.1} parent=1 // pred_region
      _
    $region37: #{tpu_custom_call.1} parent=1 // pred_fallthru
      _
    // Predicated region
    $region38: #{tpu_custom_call.1} parent=1 // pred_check
      _
    $region39: #{tpu_custom_call.1} parent=1 // pred_check_branch
      %87 = sbr.rel (0) target = $region41
    $region40: #{tpu_custom_call.1} parent=1 // pred_region
      %88 = dma.done [#allocation3], 128
    $region41: #{tpu_custom_call.1} parent=1 // pred_fallthru
      _
    // Predicated region
    $region42: #{tpu_custom_call.1} parent=1 // pred_check
      _
    $region43: #{tpu_custom_call.1} parent=1 // pred_check_branch
      %90 = sbr.rel (0) target = $region45
    $region44: #{tpu_custom_call.1} parent=1 // pred_region
      %91 = dma.done [#allocation6], 1024
    $region45: #{tpu_custom_call.1} parent=1 // pred_fallthru
      _
    // Predicated region
    $region46: #{tpu_custom_call.1} parent=1 // pred_check
      _
    $region47: #{tpu_custom_call.1} parent=1 // pred_check_branch
      %93 = sbr.rel (0) target = $region49
    $region48: #{tpu_custom_call.1} parent=1 // pred_region
      %94 = dma.done [#allocation6], 1024
    $region49: #{tpu_custom_call.1} parent=1 // pred_fallthru
      _
    // Predicated region
    $region50: #{tpu_custom_call.1} parent=1 // pred_check
      _
    $region51: #{tpu_custom_call.1} parent=1 // pred_check_branch
      %96 = sbr.rel (0) target = $region53
    $region52: #{tpu_custom_call.1} parent=1 // pred_region
      %97 = dma.done [#allocation9], 1024
    $region53: #{tpu_custom_call.1} parent=1 // pred_fallthru
      _
    // Predicated region
    $region54: #{tpu_custom_call.1} parent=1 // pred_check
      _
    $region55: #{tpu_custom_call.1} parent=1 // pred_check_branch
      %99 = sbr.rel (0) target = $region57
    $region56: #{tpu_custom_call.1} parent=1 // pred_region
      %100 = dma.done [#allocation9], 1024
    $region57: #{tpu_custom_call.1} parent=1 // pred_fallthru
      _
    %v102 = vld [vmem:[#allocation2] sm:$0xf]
    %v103 = vld [vmem:[#allocation2 + $0x4] sm:$0xf]
    %v104 = vld [vmem:[#allocation5] sm:$0xf]
    %v105 = vld [vmem:[#allocation5 + $0x4] sm:$0xf]
    %v106 = vld [vmem:[#allocation5 + $0x8] sm:$0xf]
    %v107 = vld [vmem:[#allocation5 + $0xc] sm:$0xf]
    %v108 = vld [vmem:[#allocation5 + $0x10] sm:$0xf]
    %v109 = vld [vmem:[#allocation5 + $0x14] sm:$0xf]
    %v110 = vld [vmem:[#allocation5 + $0x18] sm:$0xf]
    %v111 = vld [vmem:[#allocation5 + $0x1c] sm:$0xf]
    %v112 = vld [vmem:[#allocation5 + $0x20] sm:$0xf]
    %v113 = vld [vmem:[#allocation5 + $0x24] sm:$0xf]
    %v114 = vld [vmem:[#allocation5 + $0x28] sm:$0xf]
    %v115 = vld [vmem:[#allocation5 + $0x2c] sm:$0xf]
    %v116 = vld [vmem:[#allocation5 + $0x30] sm:$0xf]
    %v117 = vld [vmem:[#allocation5 + $0x34] sm:$0xf]
    %v118 = vld [vmem:[#allocation5 + $0x38] sm:$0xf]
    %v119 = vld [vmem:[#allocation5 + $0x3c] sm:$0xf]
    %v120 = vld [vmem:[%s2] sm:$0x1]
    %v122 = vlaneseq
    %v123 = vshrl.u32 %v122, 7
    %v124 = vsub.s32 0, %v123
    %v125 = vrot.slane %v120, %v124
    %v129 = vunpack.c.l.b16 %v102
    %v130 = vunpack.c.l.b16 %v103
    %v131 = vpack.c.b16 %v130, %v129
    %v149 = vunpack.c.l.b16 %v104
    %v150 = vunpack.c.l.b16 %v105
    %v151 = vunpack.c.l.b16 %v106
    %v152 = vunpack.c.l.b16 %v107
    %v153 = vunpack.c.l.b16 %v108
    %v154 = vunpack.c.l.b16 %v109
    %v155 = vunpack.c.l.b16 %v110
    %v156 = vunpack.c.l.b16 %v111
    %v157 = vunpack.c.l.b16 %v112
    %v158 = vunpack.c.l.b16 %v113
    %v159 = vunpack.c.l.b16 %v114
    %v160 = vunpack.c.l.b16 %v115
    %v161 = vunpack.c.l.b16 %v116
    %v162 = vunpack.c.l.b16 %v117
    %v163 = vunpack.c.l.b16 %v118
    %v164 = vunpack.c.l.b16 %v119
    %v165 = vpack.c.b16 %v150, %v149
    %v166 = vpack.c.b16 %v152, %v151
    %v167 = vpack.c.b16 %v154, %v153
    %v168 = vpack.c.b16 %v156, %v155
    %v169 = vpack.c.b16 %v158, %v157
    %v170 = vpack.c.b16 %v160, %v159
    %v171 = vpack.c.b16 %v162, %v161
    %v172 = vpack.c.b16 %v164, %v163
    %181 = vmatprep.subr.bf16.mxu0 0
    %182 = vmatpush1.bf16.msra.mxu0 %v172
    %183 = vmatprep.subr.bf16.mxu0 0
    %184 = vmatpush1.bf16.msra.mxu0 %v171
    %185 = vmatprep.subr.bf16.mxu0 0
    %186 = vmatpush1.bf16.msra.mxu0 %v170
    %187 = vmatprep.subr.bf16.mxu0 0
    %188 = vmatpush1.bf16.msra.mxu0 %v169
    %189 = vmatprep.subr.bf16.mxu0 0
    %190 = vmatpush1.bf16.msra.mxu0 %v168
    %191 = vmatprep.subr.bf16.mxu0 0
    %192 = vmatpush1.bf16.msra.mxu0 %v167
    %193 = vmatprep.subr.bf16.mxu0 0
    %194 = vmatpush1.bf16.msra.mxu0 %v166
    %195 = vmatprep.subr.bf16.mxu0 0
    %196 = vmatpush1.bf16.msra.mxu0 %v165
    %197 = vmatprep.subr.bf16.mxu0 0
    %198 = vmatpush2.bf16.msra.mxu0 0
    %199 = vmatprep.subr.bf16.mxu0 0
    %200 = vmatpush2.bf16.msra.mxu0 0
    %201 = vmatprep.subr.bf16.mxu0 0
    %202 = vmatpush2.bf16.msra.mxu0 0
    %203 = vmatprep.subr.bf16.mxu0 0
    %204 = vmatpush2.bf16.msra.mxu0 0
    %205 = vmatprep.subr.bf16.mxu0 0
    %206 = vmatpush2.bf16.msra.mxu0 0
    %207 = vmatprep.subr.bf16.mxu0 0
    %208 = vmatpush2.bf16.msra.mxu0 0
    %209 = vmatprep.subr.bf16.mxu0 0
    %210 = vmatpush2.bf16.msra.mxu0 0
    %211 = vmatprep.subr.bf16.mxu0 0
    %212 = vmatpush2.bf16.msra.mxu0 0
    %213 = vmatprep.mubr.bf16.mxu0 0
    %214 = vmatmul.mubr.bf16.gmra.mxu0 %v131
    %v215 = vpop.f32.mrf.mxu0
    %v216 = vadd.f32 %v125, %v215
    %v217 = vpop.f32.mrf.mxu0
    %v218 = vpop.f32.mrf.mxu0
    %v219 = vadd.f32 %v125, %v218
    %v220 = vpop.f32.mrf.mxu0
    %221 = vdwg.mxu0
    %v222 = vmax.f32 %v216, 0.0
    %v223 = vmax.f32 %v219, 0.0
    %v224 = vpack.c.bf16 %v223, %v222
    %v225 = vld [vmem:[#allocation7] sm:$0xf]
    %v226 = vld [vmem:[#allocation7 + $0x4] sm:$0xf]
    %v227 = vld [vmem:[#allocation7 + $0x8] sm:$0xf]
    %v228 = vld [vmem:[#allocation7 + $0xc] sm:$0xf]
    %v229 = vld [vmem:[#allocation7 + $0x10] sm:$0xf]
    %v230 = vld [vmem:[#allocation7 + $0x14] sm:$0xf]
    %v231 = vld [vmem:[#allocation7 + $0x18] sm:$0xf]
    %v232 = vld [vmem:[#allocation7 + $0x1c] sm:$0xf]
    %v233 = vld [vmem:[#allocation7 + $0x20] sm:$0xf]
    %v234 = vld [vmem:[#allocation7 + $0x24] sm:$0xf]
    %v235 = vld [vmem:[#allocation7 + $0x28] sm:$0xf]
    %v236 = vld [vmem:[#allocation7 + $0x2c] sm:$0xf]
    %v237 = vld [vmem:[#allocation7 + $0x30] sm:$0xf]
    %v238 = vld [vmem:[#allocation7 + $0x34] sm:$0xf]
    %v239 = vld [vmem:[#allocation7 + $0x38] sm:$0xf]
    %v240 = vld [vmem:[#allocation7 + $0x3c] sm:$0xf]
    %v241 = vld [vmem:[%s4] sm:$0x1]
    %v243 = vlaneseq
    %v244 = vshrl.u32 %v243, 7
    %v245 = vsub.s32 0, %v244
    %v246 = vrot.slane %v241, %v245
    %v264 = vunpack.c.l.b16 %v225
    %v265 = vunpack.c.l.b16 %v226
    %v266 = vunpack.c.l.b16 %v227
    %v267 = vunpack.c.l.b16 %v228
    %v268 = vunpack.c.l.b16 %v229
    %v269 = vunpack.c.l.b16 %v230
    %v270 = vunpack.c.l.b16 %v231
    %v271 = vunpack.c.l.b16 %v232
    %v272 = vunpack.c.l.b16 %v233
    %v273 = vunpack.c.l.b16 %v234
    %v274 = vunpack.c.l.b16 %v235
    %v275 = vunpack.c.l.b16 %v236
    %v276 = vunpack.c.l.b16 %v237
    %v277 = vunpack.c.l.b16 %v238
    %v278 = vunpack.c.l.b16 %v239
    %v279 = vunpack.c.l.b16 %v240
    %v280 = vpack.c.b16 %v265, %v264
    %v281 = vpack.c.b16 %v267, %v266
    %v282 = vpack.c.b16 %v269, %v268
    %v283 = vpack.c.b16 %v271, %v270
    %v284 = vpack.c.b16 %v273, %v272
    %v285 = vpack.c.b16 %v275, %v274
    %v286 = vpack.c.b16 %v277, %v276
    %v287 = vpack.c.b16 %v279, %v278
    %296 = vmatprep.subr.bf16.mxu0 0
    %297 = vmatpush1.bf16.msra.mxu0 %v287
    %298 = vmatprep.subr.bf16.mxu0 0
    %299 = vmatpush1.bf16.msra.mxu0 %v286
    %300 = vmatprep.subr.bf16.mxu0 0
    %301 = vmatpush1.bf16.msra.mxu0 %v285
    %302 = vmatprep.subr.bf16.mxu0 0
    %303 = vmatpush1.bf16.msra.mxu0 %v284
    %304 = vmatprep.subr.bf16.mxu0 0
    %305 = vmatpush1.bf16.msra.mxu0 %v283
    %306 = vmatprep.subr.bf16.mxu0 0
    %307 = vmatpush1.bf16.msra.mxu0 %v282
    %308 = vmatprep.subr.bf16.mxu0 0
    %309 = vmatpush1.bf16.msra.mxu0 %v281
    %310 = vmatprep.subr.bf16.mxu0 0
    %311 = vmatpush1.bf16.msra.mxu0 %v280
    %312 = vmatprep.subr.bf16.mxu0 0
    %313 = vmatpush2.bf16.msra.mxu0 0
    %314 = vmatprep.subr.bf16.mxu0 0
    %315 = vmatpush2.bf16.msra.mxu0 0
    %316 = vmatprep.subr.bf16.mxu0 0
    %317 = vmatpush2.bf16.msra.mxu0 0
    %318 = vmatprep.subr.bf16.mxu0 0
    %319 = vmatpush2.bf16.msra.mxu0 0
    %320 = vmatprep.subr.bf16.mxu0 0
    %321 = vmatpush2.bf16.msra.mxu0 0
    %322 = vmatprep.subr.bf16.mxu0 0
    %323 = vmatpush2.bf16.msra.mxu0 0
    %324 = vmatprep.subr.bf16.mxu0 0
    %325 = vmatpush2.bf16.msra.mxu0 0
    %326 = vmatprep.subr.bf16.mxu0 0
    %327 = vmatpush2.bf16.msra.mxu0 0
    %328 = vmatprep.mubr.bf16.mxu0 0
    %329 = vmatmul.mubr.bf16.gmra.mxu0 %v224
    %v330 = vpop.f32.mrf.mxu0
    %v331 = vadd.f32 %v246, %v330
    %v332 = vpop.f32.mrf.mxu0
    %v333 = vpop.f32.mrf.mxu0
    %v334 = vadd.f32 %v246, %v333
    %v335 = vpop.f32.mrf.mxu0
    %336 = vdwg.mxu0
    %v337 = vmax.f32 %v331, 0.0
    %v338 = vmax.f32 %v334, 0.0
    %v339 = vld [vmem:[#allocation8] sm:$0xf]
    %v340 = vld [vmem:[#allocation8 + $0x4] sm:$0xf]
    %v341 = vld [vmem:[#allocation8 + $0x8] sm:$0xf]
    %v342 = vld [vmem:[#allocation8 + $0xc] sm:$0xf]
    %v343 = vld [vmem:[#allocation8 + $0x10] sm:$0xf]
    %v344 = vld [vmem:[#allocation8 + $0x14] sm:$0xf]
    %v345 = vld [vmem:[#allocation8 + $0x18] sm:$0xf]
    %v346 = vld [vmem:[#allocation8 + $0x1c] sm:$0xf]
    %v347 = vld [vmem:[#allocation8 + $0x20] sm:$0xf]
    %v348 = vld [vmem:[#allocation8 + $0x24] sm:$0xf]
    %v349 = vld [vmem:[#allocation8 + $0x28] sm:$0xf]
    %v350 = vld [vmem:[#allocation8 + $0x2c] sm:$0xf]
    %v351 = vld [vmem:[#allocation8 + $0x30] sm:$0xf]
    %v352 = vld [vmem:[#allocation8 + $0x34] sm:$0xf]
    %v353 = vld [vmem:[#allocation8 + $0x38] sm:$0xf]
    %v354 = vld [vmem:[#allocation8 + $0x3c] sm:$0xf]
    %v355 = vld [vmem:[%s6] sm:$0x1]
    %v357 = vlaneseq
    %v358 = vshrl.u32 %v357, 7
    %v359 = vsub.s32 0, %v358
    %v360 = vrot.slane %v355, %v359
    %v362 = vpack.c.bf16 %v338, %v337
    %v379 = vunpack.c.l.b16 %v339
    %v380 = vunpack.c.l.b16 %v340
    %v381 = vunpack.c.l.b16 %v341
    %v382 = vunpack.c.l.b16 %v342
    %v383 = vunpack.c.l.b16 %v343
    %v384 = vunpack.c.l.b16 %v344
    %v385 = vunpack.c.l.b16 %v345
    %v386 = vunpack.c.l.b16 %v346
    %v387 = vunpack.c.l.b16 %v347
    %v388 = vunpack.c.l.b16 %v348
    %v389 = vunpack.c.l.b16 %v349
    %v390 = vunpack.c.l.b16 %v350
    %v391 = vunpack.c.l.b16 %v351
    %v392 = vunpack.c.l.b16 %v352
    %v393 = vunpack.c.l.b16 %v353
    %v394 = vunpack.c.l.b16 %v354
    %v395 = vpack.c.b16 %v380, %v379
    %v396 = vpack.c.b16 %v382, %v381
    %v397 = vpack.c.b16 %v384, %v383
    %v398 = vpack.c.b16 %v386, %v385
    %v399 = vpack.c.b16 %v388, %v387
    %v400 = vpack.c.b16 %v390, %v389
    %v401 = vpack.c.b16 %v392, %v391
    %v402 = vpack.c.b16 %v394, %v393
    %411 = vmatprep.subr.bf16.mxu0 0
    %412 = vmatpush1.bf16.msra.mxu0 %v402
    %413 = vmatprep.subr.bf16.mxu0 0
    %414 = vmatpush1.bf16.msra.mxu0 %v401
    %415 = vmatprep.subr.bf16.mxu0 0
    %416 = vmatpush1.bf16.msra.mxu0 %v400
    %417 = vmatprep.subr.bf16.mxu0 0
    %418 = vmatpush1.bf16.msra.mxu0 %v399
    %419 = vmatprep.subr.bf16.mxu0 0
    %420 = vmatpush1.bf16.msra.mxu0 %v398
    %421 = vmatprep.subr.bf16.mxu0 0
    %422 = vmatpush1.bf16.msra.mxu0 %v397
    %423 = vmatprep.subr.bf16.mxu0 0
    %424 = vmatpush1.bf16.msra.mxu0 %v396
    %425 = vmatprep.subr.bf16.mxu0 0
    %426 = vmatpush1.bf16.msra.mxu0 %v395
    %427 = vmatprep.subr.bf16.mxu0 0
    %428 = vmatpush2.bf16.msra.mxu0 0
    %429 = vmatprep.subr.bf16.mxu0 0
    %430 = vmatpush2.bf16.msra.mxu0 0
    %431 = vmatprep.subr.bf16.mxu0 0
    %432 = vmatpush2.bf16.msra.mxu0 0
    %433 = vmatprep.subr.bf16.mxu0 0
    %434 = vmatpush2.bf16.msra.mxu0 0
    %435 = vmatprep.subr.bf16.mxu0 0
    %436 = vmatpush2.bf16.msra.mxu0 0
    %437 = vmatprep.subr.bf16.mxu0 0
    %438 = vmatpush2.bf16.msra.mxu0 0
    %439 = vmatprep.subr.bf16.mxu0 0
    %440 = vmatpush2.bf16.msra.mxu0 0
    %441 = vmatprep.subr.bf16.mxu0 0
    %442 = vmatpush2.bf16.msra.mxu0 0
    %443 = vmatprep.mubr.bf16.mxu0 0
    %444 = vmatmul.mubr.bf16.gmra.mxu0 %v362
    %v445 = vpop.f32.mrf.mxu0
    %v446 = vadd.f32 %v360, %v445
    %v447 = vpop.f32.mrf.mxu0
    %v448 = vpop.f32.mrf.mxu0
    %v449 = vadd.f32 %v360, %v448
    %v450 = vpop.f32.mrf.mxu0
    %451 = vdwg.mxu0
    %v452 = vmax.f32 %v446, 0.0
    %v453 = vmax.f32 %v449, 0.0
    %v454 = vpack.c.bf16 %v453, %v452
    %455 = vmatprep.subr.bf16.mxu0 0
    %456 = vmatpush1.bf16.msra.mxu0 %v402
    %457 = vmatprep.subr.bf16.mxu0 0
    %458 = vmatpush1.bf16.msra.mxu0 %v401
    %459 = vmatprep.subr.bf16.mxu0 0
    %460 = vmatpush1.bf16.msra.mxu0 %v400
    %461 = vmatprep.subr.bf16.mxu0 0
    %462 = vmatpush1.bf16.msra.mxu0 %v399
    %463 = vmatprep.subr.bf16.mxu0 0
    %464 = vmatpush1.bf16.msra.mxu0 %v398
    %465 = vmatprep.subr.bf16.mxu0 0
    %466 = vmatpush1.bf16.msra.mxu0 %v397
    %467 = vmatprep.subr.bf16.mxu0 0
    %468 = vmatpush1.bf16.msra.mxu0 %v396
    %469 = vmatprep.subr.bf16.mxu0 0
    %470 = vmatpush1.bf16.msra.mxu0 %v395
    %471 = vmatprep.subr.bf16.mxu0 0
    %472 = vmatpush2.bf16.msra.mxu0 0
    %473 = vmatprep.subr.bf16.mxu0 0
    %474 = vmatpush2.bf16.msra.mxu0 0
    %475 = vmatprep.subr.bf16.mxu0 0
    %476 = vmatpush2.bf16.msra.mxu0 0
    %477 = vmatprep.subr.bf16.mxu0 0
    %478 = vmatpush2.bf16.msra.mxu0 0
    %479 = vmatprep.subr.bf16.mxu0 0
    %480 = vmatpush2.bf16.msra.mxu0 0
    %481 = vmatprep.subr.bf16.mxu0 0
    %482 = vmatpush2.bf16.msra.mxu0 0
    %483 = vmatprep.subr.bf16.mxu0 0
    %484 = vmatpush2.bf16.msra.mxu0 0
    %485 = vmatprep.subr.bf16.mxu0 0
    %486 = vmatpush2.bf16.msra.mxu0 0
    %487 = vmatprep.mubr.bf16.mxu0 0
    %488 = vmatmul.mubr.bf16.gmra.mxu0 %v454
    %v489 = vpop.f32.mrf.mxu0
    %v490 = vadd.f32 %v360, %v489
    %v491 = vpop.f32.mrf.mxu0
    %v492 = vpop.f32.mrf.mxu0
    %v493 = vadd.f32 %v360, %v492
    %v494 = vpop.f32.mrf.mxu0
    %495 = vdwg.mxu0
    %v496 = vmax.f32 %v490, 0.0
    %v497 = vmax.f32 %v493, 0.0
    %v498 = vpack.c.bf16 %v497, %v496
    %v499 = vld [vmem:[#allocation10] sm:$0xf]
    %v500 = vld [vmem:[#allocation10 + $0x4] sm:$0xf]
    %v501 = vld [vmem:[#allocation10 + $0x8] sm:$0xf]
    %v502 = vld [vmem:[#allocation10 + $0xc] sm:$0xf]
    %v503 = vld [vmem:[#allocation10 + $0x10] sm:$0xf]
    %v504 = vld [vmem:[#allocation10 + $0x14] sm:$0xf]
    %v505 = vld [vmem:[#allocation10 + $0x18] sm:$0xf]
    %v506 = vld [vmem:[#allocation10 + $0x1c] sm:$0xf]
    %v507 = vld [vmem:[#allocation10 + $0x20] sm:$0xf]
    %v508 = vld [vmem:[#allocation10 + $0x24] sm:$0xf]
    %v509 = vld [vmem:[#allocation10 + $0x28] sm:$0xf]
    %v510 = vld [vmem:[#allocation10 + $0x2c] sm:$0xf]
    %v511 = vld [vmem:[#allocation10 + $0x30] sm:$0xf]
    %v512 = vld [vmem:[#allocation10 + $0x34] sm:$0xf]
    %v513 = vld [vmem:[#allocation10 + $0x38] sm:$0xf]
    %v514 = vld [vmem:[#allocation10 + $0x3c] sm:$0xf]
    %v515 = vld [vmem:[%s8] sm:$0x1]
    %v517 = vlaneseq
    %v518 = vshrl.u32 %v517, 7
    %v519 = vsub.s32 0, %v518
    %v520 = vrot.slane %v515, %v519
    %v538 = vunpack.c.l.b16 %v499
    %v539 = vunpack.c.l.b16 %v500
    %v540 = vunpack.c.l.b16 %v501
    %v541 = vunpack.c.l.b16 %v502
    %v542 = vunpack.c.l.b16 %v503
    %v543 = vunpack.c.l.b16 %v504
    %v544 = vunpack.c.l.b16 %v505
    %v545 = vunpack.c.l.b16 %v506
    %v546 = vunpack.c.l.b16 %v507
    %v547 = vunpack.c.l.b16 %v508
    %v548 = vunpack.c.l.b16 %v509
    %v549 = vunpack.c.l.b16 %v510
    %v550 = vunpack.c.l.b16 %v511
    %v551 = vunpack.c.l.b16 %v512
    %v552 = vunpack.c.l.b16 %v513
    %v553 = vunpack.c.l.b16 %v514
    %v554 = vpack.c.b16 %v539, %v538
    %v555 = vpack.c.b16 %v541, %v540
    %v556 = vpack.c.b16 %v543, %v542
    %v557 = vpack.c.b16 %v545, %v544
    %v558 = vpack.c.b16 %v547, %v546
    %v559 = vpack.c.b16 %v549, %v548
    %v560 = vpack.c.b16 %v551, %v550
    %v561 = vpack.c.b16 %v553, %v552
    %570 = vmatprep.subr.bf16.mxu0 0
    %571 = vmatpush1.bf16.msra.mxu0 %v561
    %572 = vmatprep.subr.bf16.mxu0 0
    %573 = vmatpush1.bf16.msra.mxu0 %v560
    %574 = vmatprep.subr.bf16.mxu0 0
    %575 = vmatpush1.bf16.msra.mxu0 %v559
    %576 = vmatprep.subr.bf16.mxu0 0
    %577 = vmatpush1.bf16.msra.mxu0 %v558
    %578 = vmatprep.subr.bf16.mxu0 0
    %579 = vmatpush1.bf16.msra.mxu0 %v557
    %580 = vmatprep.subr.bf16.mxu0 0
    %581 = vmatpush1.bf16.msra.mxu0 %v556
    %582 = vmatprep.subr.bf16.mxu0 0
    %583 = vmatpush1.bf16.msra.mxu0 %v555
    %584 = vmatprep.subr.bf16.mxu0 0
    %585 = vmatpush1.bf16.msra.mxu0 %v554
    %586 = vmatprep.subr.bf16.mxu0 0
    %587 = vmatpush2.bf16.msra.mxu0 0
    %588 = vmatprep.subr.bf16.mxu0 0
    %589 = vmatpush2.bf16.msra.mxu0 0
    %590 = vmatprep.subr.bf16.mxu0 0
    %591 = vmatpush2.bf16.msra.mxu0 0
    %592 = vmatprep.subr.bf16.mxu0 0
    %593 = vmatpush2.bf16.msra.mxu0 0
    %594 = vmatprep.subr.bf16.mxu0 0
    %595 = vmatpush2.bf16.msra.mxu0 0
    %596 = vmatprep.subr.bf16.mxu0 0
    %597 = vmatpush2.bf16.msra.mxu0 0
    %598 = vmatprep.subr.bf16.mxu0 0
    %599 = vmatpush2.bf16.msra.mxu0 0
    %600 = vmatprep.subr.bf16.mxu0 0
    %601 = vmatpush2.bf16.msra.mxu0 0
    %602 = vmatprep.mubr.bf16.mxu0 0
    %603 = vmatmul.mubr.bf16.gmra.mxu0 %v498
    %v604 = vpop.f32.mrf.mxu0
    %v605 = vadd.f32 %v520, %v604
    %v606 = vpop.f32.mrf.mxu0
    %v607 = vpop.f32.mrf.mxu0
    %v608 = vadd.f32 %v520, %v607
    %v609 = vpop.f32.mrf.mxu0
    %610 = vdwg.mxu0
    %611 = vst [vmem:[#allocation11] sm:$0xff] %v605
    %612 = vst [vmem:[#allocation11 + $0x8] sm:$0xff] %v608
    // Predicated region
    $region58: #{tpu_custom_call.1} parent=1 // pred_check
      _
    $region59: #{tpu_custom_call.1} parent=1 // pred_check_branch
      %614 = sbr.rel (0) target = $region61
    $region60: #{tpu_custom_call.1} parent=1 // pred_region
      %s616 = ssub.s32 256, 256
      %617 = vsyncadd [#allocation4], %s616
      %s618 = sshll.u32 [#allocation11], 4
      %s619 = int_to_ptr.vmem [resolvable:$true] %s618
      %624 = dma.vmem_to_hbm [thread:$0]  %s619, 256, %s9, [#allocation4], 128, 128, 8
    $region61: #{tpu_custom_call.1} parent=1 // pred_fallthru
      _
    // Predicated region
    $region62: #{tpu_custom_call.1} parent=1 // pred_check
      _
    $region63: #{tpu_custom_call.1} parent=1 // pred_check_branch
      %626 = sbr.rel (0) target = $region65
    $region64: #{tpu_custom_call.1} parent=1 // pred_region
      %627 = dma.done [#allocation4], 256
    $region65: #{tpu_custom_call.1} parent=1 // pred_fallthru
      _
    %628 = vsyncpa [#allocation3], 1
    %629 = vsyncpa [#allocation6], 1
    %630 = vsyncpa [#allocation9], 1
    %631 = vsyncpa [#allocation4], 1

</llo_original>
